<compile_context>
chip_gen: v5e
topology: v5e:2x2
jax: 0.10.0
libtpu: 0.0.40
codegen_flags: <defaults>
</compile_context>

<pallas_src>
import functools

import jax
import jax.numpy as jnp
from jax.experimental import pallas as pl
from jax.experimental.pallas import tpu as pltpu


def _round_up(x, m):
    return ((x + m - 1) // m) * m


def _vmem_budget_bytes():
    """~70% of physical VMEM, generation-aware (v7x=64MiB, v5e/v6e=128MiB)."""
    try:
        cap = int(pltpu.get_tpu_info().vmem_capacity_bytes)
    except Exception:
        cap = 64 * 2**20  # conservative fallback (v7x-sized)
    return int(0.7 * cap)


def _pad2d(a, rows, cols, dtype):
    a = a.astype(dtype)
    if a.shape == (rows, cols):
        return a
    return jnp.zeros((rows, cols), dtype).at[: a.shape[0], : a.shape[1]].set(a)


# ---------------------------------------------------------------------------
# Kernel 1: batch-tiled Linear -> ReLU6 stack (weights VMEM-resident,
#           single-buffered).  Optionally emits per-tile BN statistics.
# ---------------------------------------------------------------------------
def _mlp_stack_kernel(num_layers, tile_n, n_valid, emit_stats, *refs):
    # refs layout: x_tile, (w, b) * num_layers, out_tile[, stats_tile]
    x_ref = refs[0]
    if emit_stats:
        out_ref, stats_ref = refs[-2], refs[-1]
    else:
        out_ref = refs[-1]

    # In-kernel bf16 cast (free VPU filler under the MXU) — x may arrive f32.
    h = x_ref[...].astype(jnp.bfloat16)
    idx = 1
    for _ in range(num_layers):
        w_ref = refs[idx]
        b_ref = refs[idx + 1]
        idx += 2
        # MXU matmul: bf16 x bf16 -> f32 accumulate, then bias + ReLU6.
        acc = jnp.dot(h, w_ref[...], preferred_element_type=jnp.float32)
        acc = acc + b_ref[...]
        h = jnp.clip(acc, 0.0, 6.0).astype(jnp.bfloat16)

    out_ref[...] = h.astype(out_ref.dtype)

    if emit_stats:
        # Per-tile masked column sum / sum-of-squares for BatchNorm1d.
        i = pl.program_id(0)
        rows = jax.lax.broadcasted_iota(jnp.int32, (tile_n, 1), 0) + i * tile_n
        hf = jnp.where(rows < n_valid, h.astype(jnp.float32), 0.0)
        ssum = jnp.sum(hf, axis=0, keepdims=True)           # (1, D_pad)
        ssq = jnp.sum(hf * hf, axis=0, keepdims=True)       # (1, D_pad)
        pad = jnp.zeros((6, ssum.shape[1]), jnp.float32)
        stats_ref[...] = jnp.concatenate([ssum, ssq, pad], axis=0)[None]


# ---------------------------------------------------------------------------
# Kernel 2: batch-tiled BatchNorm1d normalize (stats already reduced per tile).
# ---------------------------------------------------------------------------
def _bn_normalize_kernel(eps, n_valid, y_ref, stats_ref, gamma_ref, beta_ref,
                         out_ref):
    # stats_ref: (num_tiles, 8, D_pad) f32, row 0 = sum, row 1 = sumsq, rest 0.
    tot = jnp.sum(stats_ref[...], axis=0)                   # (8, D_pad)
    inv_n = 1.0 / float(n_valid)
    mean = tot[0:1, :] * inv_n                              # (1, D_pad)
    var = jnp.maximum(tot[1:2, :] * inv_n - mean * mean, 0.0)
    scale = jax.lax.rsqrt(var + eps) * gamma_ref[...]
    shift = beta_ref[...] - mean * scale
    out_ref[...] = (y_ref[...].astype(jnp.float32) * scale + shift).astype(
        out_ref.dtype
    )


def mlp_forward(x, layer_params, bn_params=None, eps=1e-5, tile_n=1024):
    """x: (N, widths[0]) f32.  layer_params: list of (W (in,out), b (1,out)).
    bn_params: optional (gamma (1, out), beta (1, out))."""
    n, d_in = x.shape
    num_layers = len(layer_params)
    widths = [d_in] + [w.shape[1] for (w, _) in layer_params]
    pads = [_round_up(d, 128) for d in widths]
    d_out = widths[-1]
    use_bn = bn_params is not None

    budget = _vmem_budget_bytes()

    # Resident (single-buffered) weight/bias bytes.
    resident_bytes = sum(
        pads[i] * pads[i + 1] * 2 + pads[i + 1] * 4 for i in range(num_layers)
    )
    # TODO(synk): if resident_bytes exceeds ~0.6x VMEM (very wide layers on
    # v7x), stream the widest layer over a tiled-K grid instead of keeping it
    # resident.

    # Batch tile: large (default 1024) for roofline, 16-row aligned for bf16
    # packing, auto-shrunk so streams + widest f32 intermediate + resident
    # weights fit the per-generation VMEM budget.
    max_pad = max(pads)
    tile = max(16, _round_up(min(tile_n, _round_up(n, 16)), 16))
    while tile > 16:
        stream_bytes = (
            3 * tile * pads[0] * 4        # x stream (<= f32), up to 3 buffers
            + 2 * tile * pads[-1] * 4     # out stream (<= f32), double-buffered
            + 2 * tile * max_pad * 4      # widest-layer f32 intermediate + slack
        )
        if resident_bytes + stream_bytes <= budget:
            break
        tile = _round_up(tile // 2, 16)
    tile_n = tile
    n_pad = _round_up(n, tile_n)
    grid = (n_pad // tile_n,)
    num_tiles = grid[0]

    # The stack output feeds BN (bf16 halves writeback + re-read bytes);
    # without BN, emit the caller's dtype directly.
    out_dtype = jnp.bfloat16 if use_bn else x.dtype

    # ---- inputs: skip wrapper-side pad/cast of x when already aligned -------
    if pads[0] == d_in and n_pad == n:
        xp = x                            # kernel does the bf16 cast in VMEM
    else:
        xp = (
            jnp.zeros((n_pad, pads[0]), jnp.bfloat16)
            .at[:n, :d_in]
            .set(x.astype(jnp.bfloat16))
        )

    inputs = [xp]
    in_specs = [
        pl.BlockSpec(
            (tile_n, pads[0]),
            lambda i: (i, 0),
            pipeline_mode=pl.Buffered(min(3, num_tiles)),
        )
    ]
    for li, (w, b) in enumerate(layer_params):
        wp = _pad2d(w, pads[li], pads[li + 1], jnp.bfloat16)
        bp = _pad2d(b, 1, pads[li + 1], jnp.float32)
        inputs += [wp, bp]
        # Constant block index + single buffering => truly VMEM-resident
        # weights (no re-DMA, no 2x double-buffer cost).
        in_specs += [
            pl.BlockSpec(wp.shape, lambda i: (0, 0), pipeline_mode=pl.Buffered(1)),
            pl.BlockSpec(bp.shape, lambda i: (0, 0), pipeline_mode=pl.Buffered(1)),
        ]

    # ---- outputs -------------------------------------------------------------
    main_out_shape = jax.ShapeDtypeStruct((n_pad, pads[-1]), out_dtype)
    main_out_spec = pl.BlockSpec((tile_n, pads[-1]), lambda i: (i, 0))
    if use_bn:
        out_shape = (
            main_out_shape,
            jax.ShapeDtypeStruct((num_tiles, 8, pads[-1]), jnp.float32),
        )
        out_specs = (
            main_out_spec,
            pl.BlockSpec((1, 8, pads[-1]), lambda i: (i, 0, 0)),
        )
    else:
        out_shape = main_out_shape
        out_specs = main_out_spec

    # ---- cost estimate (lets XLA schedule neighbors around the call) --------
    flops = 2 * n_pad * sum(pads[i] * pads[i + 1] for i in range(num_layers))
    bytes_accessed = (
        xp.size * jnp.dtype(xp.dtype).itemsize
        + resident_bytes
        + n_pad * pads[-1] * jnp.dtype(out_dtype).itemsize
        + (num_tiles * 8 * pads[-1] * 4 if use_bn else 0)
    )
    cost = pl.CostEstimate(
        flops=flops, transcendentals=0, bytes_accessed=bytes_accessed
    )

    compiler_params = pltpu.CompilerParams(
        dimension_semantics=("parallel",),
        vmem_limit_bytes=budget,
    )

    kern = functools.partial(_mlp_stack_kernel, num_layers, tile_n, n, use_bn)
    result = pl.pallas_call(
        kern,
        out_shape=out_shape,
        grid=grid,
        in_specs=in_specs,
        out_specs=out_specs,
        compiler_params=compiler_params,
        cost_estimate=cost,
    )(*inputs)

    if not use_bn:
        mlp_out = result
        if n_pad != n or pads[-1] != d_out:
            mlp_out = mlp_out[:n, :d_out]
        return mlp_out.astype(x.dtype)

    mlp_out, stats = result

    # ---- BatchNorm1d normalize pass (batch-tiled; stats reduced in-kernel).
    # Padded batch rows were masked out of the statistics inside kernel 1, so
    # no wrapper-side slice (extra HBM round trip) is needed here.
    gamma, beta = bn_params
    gamma_p = _pad2d(gamma.reshape(1, -1), 1, pads[-1], jnp.float32)
    beta_p = _pad2d(beta.reshape(1, -1), 1, pads[-1], jnp.float32)

    bn_out = pl.pallas_call(
        functools.partial(_bn_normalize_kernel, eps, n),
        out_shape=jax.ShapeDtypeStruct((n_pad, pads[-1]), x.dtype),
        grid=grid,
        in_specs=[
            pl.BlockSpec((tile_n, pads[-1]), lambda i: (i, 0)),
            pl.BlockSpec(
                (num_tiles, 8, pads[-1]),
                lambda i: (0, 0, 0),
                pipeline_mode=pl.Buffered(1),
            ),
            pl.BlockSpec((1, pads[-1]), lambda i: (0, 0),
                         pipeline_mode=pl.Buffered(1)),
            pl.BlockSpec((1, pads[-1]), lambda i: (0, 0),
                         pipeline_mode=pl.Buffered(1)),
        ],
        out_specs=pl.BlockSpec((tile_n, pads[-1]), lambda i: (i, 0)),
        compiler_params=pltpu.CompilerParams(
            dimension_semantics=("parallel",),
            vmem_limit_bytes=budget,
        ),
    )(mlp_out, stats, gamma_p, beta_p)

    if n_pad != n or pads[-1] != d_out:
        bn_out = bn_out[:n, :d_out]
    return bn_out


def init_mlp_params(key, widths):
    """Deterministic synthetic init (PyTorch-style Linear init). W is (in, out)."""
    params = []
    for m in range(len(widths) - 1):
        key, kw, kb = jax.random.split(key, 3)
        fan_in = widths[m]
        bound = 1.0 / jnp.sqrt(fan_in)
        w = jax.random.uniform(
            kw, (widths[m], widths[m + 1]), jnp.float32, -bound, bound
        )
        b = jax.random.uniform(kb, (1, widths[m + 1]), jnp.float32, -bound, bound)
        params.append((w, b))
    # BatchNorm1d default init: gamma = 1, beta = 0
    gamma = jnp.ones((1, widths[-1]), jnp.float32)
    beta = jnp.zeros((1, widths[-1]), jnp.float32)
    return params, (gamma, beta)


def mlp_reference(x, layer_params, bn_params=None, eps=1e-5):
    """Pure-JAX reference mirroring the kernel's bf16 matmul / f32 accumulate."""
    h = x.astype(jnp.bfloat16)
    for (w, b) in layer_params:
        acc = (
            jnp.dot(h, w.astype(jnp.bfloat16), preferred_element_type=jnp.float32) + b
        )
        h = jnp.clip(acc, 0.0, 6.0).astype(jnp.bfloat16)
    if bn_params is None:
        return h.astype(x.dtype)
    gamma, beta = bn_params
    hf = h.astype(jnp.float32)
    mean = jnp.mean(hf, axis=0, keepdims=True)
    var = jnp.mean((hf - mean) ** 2, axis=0, keepdims=True)
    return (hf - mean) * jax.lax.rsqrt(var + eps) * gamma + beta


if __name__ == "__main__":
    key = jax.random.PRNGKey(0)
    widths = [16, 32, 8]   # [in_channel, hidden, out_channel]
    batch = 8              # NOTE: at this size the kernel is launch-overhead
                           # bound; amortize by stacking inputs to M >= 512.

    kx, kp = jax.random.split(key)
    x = jax.random.normal(kx, (batch, widths[0]), jnp.float32)
    layer_params, bn_params = init_mlp_params(kp, widths)

    # With BatchNorm1d (training-mode batch statistics, as in nn.BatchNorm1d
    # default forward during training).
    out = mlp_forward(x, layer_params, bn_params)
    out = jax.block_until_ready(out)
    ref = mlp_reference(x, layer_params, bn_params)
    assert out.shape == (batch, widths[-1])
    assert jnp.allclose(out, ref, atol=2e-2, rtol=2e-2), "BN path mismatch"

    # Without BatchNorm (bn=False in the PyTorch module).
    out_nobn = mlp_forward(x, layer_params, None)
    out_nobn = jax.block_until_ready(out_nobn)
    ref_nobn = mlp_reference(x, layer_params, None)
    assert out_nobn.shape == (batch, widths[-1])
    assert jnp.allclose(out_nobn, ref_nobn, atol=2e-2, rtol=2e-2), "no-BN mismatch"

    print("KERNEL_OK")
</pallas_src>

<mosaic_0001>
module attributes {stable_mosaic.version = 11 : i64} {
  func.func @_mlp_stack_kernel(%arg0: i32, %arg1: memref<16x128xbf16, #tpu.memory_space<vmem>>, %arg2: memref<128x128xbf16, #tpu.memory_space<vmem>>, %arg3: memref<1x128xf32, #tpu.memory_space<vmem>>, %arg4: memref<128x128xbf16, #tpu.memory_space<vmem>>, %arg5: memref<1x128xf32, #tpu.memory_space<vmem>>, %arg6: memref<16x128xbf16, #tpu.memory_space<vmem>>, %arg7: memref<1x8x128xf32, #tpu.memory_space<vmem>>) attributes {dimension_semantics = [#tpu.dimension_semantics<parallel>], iteration_bounds = array<i64: 1>, scalar_prefetch = 0 : i64, scratch_operands = 0 : i64, tpu.core_type = #tpu.core_type<tc>, window_params = [{pipeline_mode = #tpu.pipeline_mode<synchronous>, transform_indices = @transform_0, window_bounds = array<i64: 16, 128>}, {pipeline_mode = #tpu.pipeline_mode<synchronous>, transform_indices = @transform_1, window_bounds = array<i64: 128, 128>}, {pipeline_mode = #tpu.pipeline_mode<synchronous>, transform_indices = @transform_2, window_bounds = array<i64: 1, 128>}, {pipeline_mode = #tpu.pipeline_mode<synchronous>, transform_indices = @transform_3, window_bounds = array<i64: 128, 128>}, {pipeline_mode = #tpu.pipeline_mode<synchronous>, transform_indices = @transform_4, window_bounds = array<i64: 1, 128>}, {transform_indices = @transform_5, window_bounds = array<i64: 16, 128>}, {transform_indices = @transform_6, window_bounds = array<i64: 1, 8, 128>}]} {
    %c0 = arith.constant 0 : index
    %c0_0 = arith.constant 0 : index
    %0 = vector.load %arg1[%c0, %c0_0] : memref<16x128xbf16, #tpu.memory_space<vmem>>, vector<16x128xbf16>
    %c0_1 = arith.constant 0 : index
    %c0_2 = arith.constant 0 : index
    %1 = vector.load %arg2[%c0_1, %c0_2] : memref<128x128xbf16, #tpu.memory_space<vmem>>, vector<128x128xbf16>
    %cst = arith.constant dense<0.000000e+00> : vector<16x128xf32>
    %2 = tpu.matmul %0, %1, %cst {dimension_numbers = #tpu.dot_dimension_numbers<[1], [0], [0], [1], [0, 0, 1, 1], [], []>} : vector<16x128xbf16>, vector<128x128xbf16>, vector<16x128xf32> -> vector<16x128xf32>
    %c0_3 = arith.constant 0 : index
    %c0_4 = arith.constant 0 : index
    %3 = vector.load %arg3[%c0_3, %c0_4] : memref<1x128xf32, #tpu.memory_space<vmem>>, vector<1x128xf32>
    %4 = vector.broadcast %3 : vector<1x128xf32> to vector<16x128xf32>
    %5 = arith.addf %2, %4 : vector<16x128xf32>
    %cst_5 = arith.constant 0.000000e+00 : f32
    %cst_6 = arith.constant 6.000000e+00 : f32
    %6 = vector.broadcast %cst_5 : f32 to vector<16x128xf32>
    %7 = arith.maximumf %6, %5 : vector<16x128xf32>
    %8 = vector.broadcast %cst_6 : f32 to vector<16x128xf32>
    %9 = arith.minimumf %8, %7 : vector<16x128xf32>
    %10 = arith.truncf %9 : vector<16x128xf32> to vector<16x128xbf16>
    %c0_7 = arith.constant 0 : index
    %c0_8 = arith.constant 0 : index
    %11 = vector.load %arg4[%c0_7, %c0_8] : memref<128x128xbf16, #tpu.memory_space<vmem>>, vector<128x128xbf16>
    %cst_9 = arith.constant dense<0.000000e+00> : vector<16x128xf32>
    %12 = tpu.matmul %10, %11, %cst_9 {dimension_numbers = #tpu.dot_dimension_numbers<[1], [0], [0], [1], [0, 0, 1, 1], [], []>} : vector<16x128xbf16>, vector<128x128xbf16>, vector<16x128xf32> -> vector<16x128xf32>
    %c0_10 = arith.constant 0 : index
    %c0_11 = arith.constant 0 : index
    %13 = vector.load %arg5[%c0_10, %c0_11] : memref<1x128xf32, #tpu.memory_space<vmem>>, vector<1x128xf32>
    %14 = vector.broadcast %13 : vector<1x128xf32> to vector<16x128xf32>
    %15 = arith.addf %12, %14 : vector<16x128xf32>
    %cst_12 = arith.constant 0.000000e+00 : f32
    %cst_13 = arith.constant 6.000000e+00 : f32
    %16 = vector.broadcast %cst_12 : f32 to vector<16x128xf32>
    %17 = arith.maximumf %16, %15 : vector<16x128xf32>
    %18 = vector.broadcast %cst_13 : f32 to vector<16x128xf32>
    %19 = arith.minimumf %18, %17 : vector<16x128xf32>
    %20 = arith.truncf %19 : vector<16x128xf32> to vector<16x128xbf16>
    %c0_14 = arith.constant 0 : index
    %c0_15 = arith.constant 0 : index
    %21 = vector.load %arg6[%c0_14, %c0_15] : memref<16x128xbf16, #tpu.memory_space<vmem>>, vector<16x128xbf16>
    tpu.vector_store %arg6[%c0_14, %c0_15], %20 {strides = array<i32>} : memref<16x128xbf16, #tpu.memory_space<vmem>>, vector<16x128xbf16>,
    %22 = tpu.iota {dimensions = array<i32: 0>} : vector<16x1xi32>
    %c16_i32 = arith.constant 16 : i32
    %23 = arith.muli %arg0, %c16_i32 : i32
    %24 = vector.broadcast %23 : i32 to vector<16x1xi32>
    %25 = arith.addi %22, %24 : vector<16x1xi32>
    %c8_i32 = arith.constant 8 : i32
    %26 = vector.broadcast %c8_i32 : i32 to vector<16x1xi32>
    %27 = arith.cmpi slt, %25, %26 : vector<16x1xi32>
    %28 = arith.extf %20 : vector<16x128xbf16> to vector<16x128xf32>
    %cst_16 = arith.constant 0.000000e+00 : f32
    %29 = vector.shape_cast %27 : vector<16x1xi1> to vector<16x1xi1>
    %30 = vector.broadcast %29 : vector<16x1xi1> to vector<16x128xi1>
    %31 = vector.broadcast %cst_16 : f32 to vector<16x128xf32>
    %32 = arith.select %30, %28, %31 : vector<16x128xi1>, vector<16x128xf32>
    %cst_17 = arith.constant dense<0.000000e+00> : vector<128xf32>
    %33 = vector.multi_reduction <add>, %32, %cst_17 [0] : vector<16x128xf32> to vector<128xf32>
    %34 = vector.shape_cast %33 : vector<128xf32> to vector<1x128xf32>
    %35 = arith.mulf %32, %32 : vector<16x128xf32>
    %cst_18 = arith.constant dense<0.000000e+00> : vector<128xf32>
    %36 = vector.multi_reduction <add>, %35, %cst_18 [0] : vector<16x128xf32> to vector<128xf32>
    %37 = vector.shape_cast %36 : vector<128xf32> to vector<1x128xf32>
    %cst_19 = arith.constant 0.000000e+00 : f32
    %38 = vector.broadcast %cst_19 : f32 to vector<6x128xf32>
    %39 = tpu.concatenate %34, %37, %38 in 0 : vector<1x128xf32>, vector<1x128xf32>, vector<6x128xf32> -> vector<8x128xf32>
    %40 = vector.shape_cast %39 : vector<8x128xf32> to vector<1x8x128xf32>
    %c0_20 = arith.constant 0 : index
    %c0_21 = arith.constant 0 : index
    %c0_22 = arith.constant 0 : index
    %41 = vector.load %arg7[%c0_20, %c0_21, %c0_22] : memref<1x8x128xf32, #tpu.memory_space<vmem>>, vector<1x8x128xf32>
    tpu.vector_store %arg7[%c0_20, %c0_21, %c0_22], %40 {strides = array<i32>} : memref<1x8x128xf32, #tpu.memory_space<vmem>>, vector<1x8x128xf32>,
    return
  }
  func.func @transform_0(%arg0: i32) -> (i32, i32) {
    %c0_i32 = arith.constant 0 : i32
    %c0_i32_0 = arith.constant 0 : i32
    return %arg0, %c0_i32 : i32, i32
  }
  func.func @transform_1(%arg0: i32) -> (i32, i32) {
    %c0_i32 = arith.constant 0 : i32
    %c0_i32_0 = arith.constant 0 : i32
    %c0_i32_1 = arith.constant 0 : i32
    return %c0_i32, %c0_i32_0 : i32, i32
  }
  func.func @transform_2(%arg0: i32) -> (i32, i32) {
    %c0_i32 = arith.constant 0 : i32
    %c0_i32_0 = arith.constant 0 : i32
    %c0_i32_1 = arith.constant 0 : i32
    return %c0_i32, %c0_i32_0 : i32, i32
  }
  func.func @transform_3(%arg0: i32) -> (i32, i32) {
    %c0_i32 = arith.constant 0 : i32
    %c0_i32_0 = arith.constant 0 : i32
    %c0_i32_1 = arith.constant 0 : i32
    return %c0_i32, %c0_i32_0 : i32, i32
  }
  func.func @transform_4(%arg0: i32) -> (i32, i32) {
    %c0_i32 = arith.constant 0 : i32
    %c0_i32_0 = arith.constant 0 : i32
    %c0_i32_1 = arith.constant 0 : i32
    return %c0_i32, %c0_i32_0 : i32, i32
  }
  func.func @transform_5(%arg0: i32) -> (i32, i32) {
    %c0_i32 = arith.constant 0 : i32
    %c0_i32_0 = arith.constant 0 : i32
    return %arg0, %c0_i32 : i32, i32
  }
  func.func @transform_6(%arg0: i32) -> (i32, i32, i32) {
    %c0_i32 = arith.constant 0 : i32
    %c0_i32_0 = arith.constant 0 : i32
    %c0_i32_1 = arith.constant 0 : i32
    return %arg0, %c0_i32, %c0_i32_0 : i32, i32, i32
  }
}

</mosaic_0001>

<llo_original>
// kernel: tpu_custom_call.1
$region0: #{tpu_custom_call.1}
  #allocation0 [shape = 'u32[]', space=smem, size = 0x4, offset = 0x4, fixed_abs, tag = 'smem constant byte address 0x4 - core index']
  #allocation1 [shape = 'u32[72,128]{1,0:T(1,128)}', space=vmem, size = 0x9000, scoped, tag = 'internal scratch']
  %s0 = inlined_call_operand.hbm [shape: bf16[16,128], index: 0, kind: input, shape index: {}]
  %s1 = inlined_call_operand.hbm [shape: bf16[128,128], index: 1, kind: input, shape index: {}]
  %s2 = inlined_call_operand.vmem [shape: f32[1,128], index: 2, kind: input, shape index: {}]
  %s3 = inlined_call_operand.hbm [shape: bf16[128,128], index: 3, kind: input, shape index: {}]
  %s4 = inlined_call_operand.vmem [shape: f32[1,128], index: 4, kind: input, shape index: {}]
  %s5 = inlined_call_operand.hbm [shape: bf16[16,128], index: 5, kind: output, shape index: {0}]
  %s6 = inlined_call_operand.hbm [shape: f32[1,8,128], index: 6, kind: output, shape index: {1}]
  %7 = xla_tuple %s5, %s6
  %s8 = sld [smem:[#allocation0]]
  $region50: #{tpu_custom_call.1} parent=0
    _
  %s10 = ssub.s32 1, %s8
  %s11 = scalar_select 0, %s10, %s8
  $region1: #{tpu_custom_call.1} parent=0
    #allocation2 [shape = 'u8[4096]{0}', space=vmem, size = 0x1000, scoped, tag = 'input window, operand 0, single buffered']
    #allocation3 [shape = 's32[1]{0}', space=sflag, size = 0x4, scoped, tag = 'scoped memory for tpu_custom_call.1']
    #allocation4 [shape = 's32[1]{0}', space=sflag, size = 0x4, scoped, tag = 'scoped memory for tpu_custom_call.1']
    #allocation5 [shape = 'u8[32768]{0}', space=vmem, size = 0x8000, scoped, tag = 'input window, operand 1, single buffered']
    #allocation6 [shape = 's32[1]{0}', space=sflag, size = 0x4, scoped, tag = 'scoped memory for tpu_custom_call.1']
    #allocation7 [shape = 'u8[32768]{0}', space=vmem, size = 0x8000, scoped, tag = 'input window, operand 3, single buffered']
    #allocation8 [shape = 'u8[4096]{0}', space=vmem, size = 0x1000, scoped, tag = 'output window, operand 0, single buffered']
    #allocation9 [shape = 'u8[4096]{0}', space=vmem, size = 0x1000, scoped, tag = 'output window, operand 1, single buffered']
    #allocation10 [shape = 's32[1]{0}', space=sflag, size = 0x4, scoped, tag = 'scoped memory for tpu_custom_call.1']
    %12 = vsyncpa [#allocation3], 0
    %13 = vsyncpa [#allocation6], 0
    %14 = vsyncpa [#allocation4], 0
    %15 = vsyncpa [#allocation10], 0
    // Predicated region
    $region2: #{tpu_custom_call.1} parent=1 // pred_check
      _
    $region3: #{tpu_custom_call.1} parent=1 // pred_check_branch
      %17 = sbr.rel (0) target = $region5
    $region4: #{tpu_custom_call.1} parent=1 // pred_region
      %19 = vsyncadd [#allocation3], 0
      %s20 = sshll.u32 %s0, 4
      %s21 = int_to_ptr.hbm [resolvable:$true] %s20
      %s22 = sshll.u32 [#allocation2], 4
      %s23 = int_to_ptr.vmem [resolvable:$true] %s22
      %28 = dma.hbm_to_vmem [thread:$0]  %s21, 128, %s23, [#allocation3], 64, 64, 4
    $region5: #{tpu_custom_call.1} parent=1 // pred_fallthru
      _
    // Predicated region
    $region6: #{tpu_custom_call.1} parent=1 // pred_check
      _
    $region7: #{tpu_custom_call.1} parent=1 // pred_check_branch
      %30 = sbr.rel (0) target = $region9
    $region8: #{tpu_custom_call.1} parent=1 // pred_region
      %32 = vsyncadd [#allocation6], 0
      %s33 = sshll.u32 %s1, 4
      %s34 = int_to_ptr.hbm [resolvable:$true] %s33
      %s35 = sshll.u32 [#allocation5], 4
      %s36 = int_to_ptr.vmem [resolvable:$true] %s35
      %41 = dma.hbm_to_vmem [thread:$0]  %s34, 1024, %s36, [#allocation6], 64, 64, 4
    $region9: #{tpu_custom_call.1} parent=1 // pred_fallthru
      _
    // Predicated region
    $region10: #{tpu_custom_call.1} parent=1 // pred_check
      _
    $region11: #{tpu_custom_call.1} parent=1 // pred_check_branch
      %43 = sbr.rel (0) target = $region13
    $region12: #{tpu_custom_call.1} parent=1 // pred_region
      _
    $region13: #{tpu_custom_call.1} parent=1 // pred_fallthru
      _
    // Predicated region
    $region14: #{tpu_custom_call.1} parent=1 // pred_check
      _
    $region15: #{tpu_custom_call.1} parent=1 // pred_check_branch
      %45 = sbr.rel (0) target = $region17
    $region16: #{tpu_custom_call.1} parent=1 // pred_region
      %47 = vsyncadd [#allocation6], 0
      %s48 = sshll.u32 %s3, 4
      %s49 = int_to_ptr.hbm [resolvable:$true] %s48
      %s50 = sshll.u32 [#allocation7], 4
      %s51 = int_to_ptr.vmem [resolvable:$true] %s50
      %56 = dma.hbm_to_vmem [thread:$0]  %s49, 1024, %s51, [#allocation6], 64, 64, 4
    $region17: #{tpu_custom_call.1} parent=1 // pred_fallthru
      _
    // Predicated region
    $region18: #{tpu_custom_call.1} parent=1 // pred_check
      _
    $region19: #{tpu_custom_call.1} parent=1 // pred_check_branch
      %58 = sbr.rel (0) target = $region21
    $region20: #{tpu_custom_call.1} parent=1 // pred_region
      _
    $region21: #{tpu_custom_call.1} parent=1 // pred_fallthru
      _
    // Predicated region
    $region22: #{tpu_custom_call.1} parent=1 // pred_check
      _
    $region23: #{tpu_custom_call.1} parent=1 // pred_check_branch
      %60 = sbr.rel (0) target = $region25
    $region24: #{tpu_custom_call.1} parent=1 // pred_region
      %62 = dma.done [#allocation3], 128
    $region25: #{tpu_custom_call.1} parent=1 // pred_fallthru
      _
    // Predicated region
    $region26: #{tpu_custom_call.1} parent=1 // pred_check
      _
    $region27: #{tpu_custom_call.1} parent=1 // pred_check_branch
      %64 = sbr.rel (0) target = $region29
    $region28: #{tpu_custom_call.1} parent=1 // pred_region
      %66 = dma.done [#allocation6], 1024
    $region29: #{tpu_custom_call.1} parent=1 // pred_fallthru
      _
    // Predicated region
    $region30: #{tpu_custom_call.1} parent=1 // pred_check
      _
    $region31: #{tpu_custom_call.1} parent=1 // pred_check_branch
      %68 = sbr.rel (0) target = $region33
    $region32: #{tpu_custom_call.1} parent=1 // pred_region
      %70 = dma.done [#allocation6], 1024
    $region33: #{tpu_custom_call.1} parent=1 // pred_fallthru
      _
    %v71 = vld [vmem:[#allocation2] sm:$0xf]
    %v72 = vld [vmem:[#allocation2 + $0x4] sm:$0xf]
    %v73 = vld [vmem:[#allocation5] sm:$0xf]
    %v74 = vld [vmem:[#allocation5 + $0x4] sm:$0xf]
    %v75 = vld [vmem:[#allocation5 + $0x8] sm:$0xf]
    %v76 = vld [vmem:[#allocation5 + $0xc] sm:$0xf]
    %v77 = vld [vmem:[#allocation5 + $0x10] sm:$0xf]
    %v78 = vld [vmem:[#allocation5 + $0x14] sm:$0xf]
    %v79 = vld [vmem:[#allocation5 + $0x18] sm:$0xf]
    %v80 = vld [vmem:[#allocation5 + $0x1c] sm:$0xf]
    %v81 = vld [vmem:[#allocation5 + $0x20] sm:$0xf]
    %v82 = vld [vmem:[#allocation5 + $0x24] sm:$0xf]
    %v83 = vld [vmem:[#allocation5 + $0x28] sm:$0xf]
    %v84 = vld [vmem:[#allocation5 + $0x2c] sm:$0xf]
    %v85 = vld [vmem:[#allocation5 + $0x30] sm:$0xf]
    %v86 = vld [vmem:[#allocation5 + $0x34] sm:$0xf]
    %v87 = vld [vmem:[#allocation5 + $0x38] sm:$0xf]
    %v88 = vld [vmem:[#allocation5 + $0x3c] sm:$0xf]
    %v89 = vld [vmem:[%s2] sm:$0x1]
    %v91 = vperm.slane %v89, 0
    %v95 = vunpack.c.l.b16 %v71
    %v96 = vunpack.c.l.b16 %v72
    %v97 = vpack.c.b16 %v96, %v95
    %v115 = vunpack.c.l.b16 %v73
    %v116 = vunpack.c.l.b16 %v74
    %v117 = vunpack.c.l.b16 %v75
    %v118 = vunpack.c.l.b16 %v76
    %v119 = vunpack.c.l.b16 %v77
    %v120 = vunpack.c.l.b16 %v78
    %v121 = vunpack.c.l.b16 %v79
    %v122 = vunpack.c.l.b16 %v80
    %v123 = vunpack.c.l.b16 %v81
    %v124 = vunpack.c.l.b16 %v82
    %v125 = vunpack.c.l.b16 %v83
    %v126 = vunpack.c.l.b16 %v84
    %v127 = vunpack.c.l.b16 %v85
    %v128 = vunpack.c.l.b16 %v86
    %v129 = vunpack.c.l.b16 %v87
    %v130 = vunpack.c.l.b16 %v88
    %v131 = vpack.c.b16 %v116, %v115
    %v132 = vpack.c.b16 %v118, %v117
    %v133 = vpack.c.b16 %v120, %v119
    %v134 = vpack.c.b16 %v122, %v121
    %v135 = vpack.c.b16 %v124, %v123
    %v136 = vpack.c.b16 %v126, %v125
    %v137 = vpack.c.b16 %v128, %v127
    %v138 = vpack.c.b16 %v130, %v129
    %147 = vmatpush.bf16.msra.mxu0 %v138
    %148 = vmatpush.bf16.msra.mxu0 %v137
    %149 = vmatpush.bf16.msra.mxu0 %v136
    %150 = vmatpush.bf16.msra.mxu0 %v135
    %151 = vmatpush.bf16.msra.mxu0 %v134
    %152 = vmatpush.bf16.msra.mxu0 %v133
    %153 = vmatpush.bf16.msra.mxu0 %v132
    %154 = vmatpush.bf16.msra.mxu0 %v131
    %155 = vmatmul.bf16.gmra.mxu0 %v97
    %v156 = vpop.f32.mrf.mxu0
    %v157 = vadd.f32 %v91, %v156
    %v158 = vpop.f32.mrf.mxu0
    %v159 = vadd.f32 %v91, %v158
    %160 = vdwg.mxu0
    %v161 = vmax.f32 %v157, 0.0
    %v162 = vmax.f32 %v159, 0.0
    %v163 = vmin.f32 %v161, 6.0
    %v164 = vmin.f32 %v162, 6.0
    %v165 = vpack.c.bf16 %v164, %v163
    %v166 = vld [vmem:[#allocation7] sm:$0xf]
    %v167 = vld [vmem:[#allocation7 + $0x4] sm:$0xf]
    %v168 = vld [vmem:[#allocation7 + $0x8] sm:$0xf]
    %v169 = vld [vmem:[#allocation7 + $0xc] sm:$0xf]
    %v170 = vld [vmem:[#allocation7 + $0x10] sm:$0xf]
    %v171 = vld [vmem:[#allocation7 + $0x14] sm:$0xf]
    %v172 = vld [vmem:[#allocation7 + $0x18] sm:$0xf]
    %v173 = vld [vmem:[#allocation7 + $0x1c] sm:$0xf]
    %v174 = vld [vmem:[#allocation7 + $0x20] sm:$0xf]
    %v175 = vld [vmem:[#allocation7 + $0x24] sm:$0xf]
    %v176 = vld [vmem:[#allocation7 + $0x28] sm:$0xf]
    %v177 = vld [vmem:[#allocation7 + $0x2c] sm:$0xf]
    %v178 = vld [vmem:[#allocation7 + $0x30] sm:$0xf]
    %v179 = vld [vmem:[#allocation7 + $0x34] sm:$0xf]
    %v180 = vld [vmem:[#allocation7 + $0x38] sm:$0xf]
    %v181 = vld [vmem:[#allocation7 + $0x3c] sm:$0xf]
    %v182 = vld [vmem:[%s4] sm:$0x1]
    %v184 = vperm.slane %v182, 0
    %v202 = vunpack.c.l.b16 %v166
    %v203 = vunpack.c.l.b16 %v167
    %v204 = vunpack.c.l.b16 %v168
    %v205 = vunpack.c.l.b16 %v169
    %v206 = vunpack.c.l.b16 %v170
    %v207 = vunpack.c.l.b16 %v171
    %v208 = vunpack.c.l.b16 %v172
    %v209 = vunpack.c.l.b16 %v173
    %v210 = vunpack.c.l.b16 %v174
    %v211 = vunpack.c.l.b16 %v175
    %v212 = vunpack.c.l.b16 %v176
    %v213 = vunpack.c.l.b16 %v177
    %v214 = vunpack.c.l.b16 %v178
    %v215 = vunpack.c.l.b16 %v179
    %v216 = vunpack.c.l.b16 %v180
    %v217 = vunpack.c.l.b16 %v181
    %v218 = vpack.c.b16 %v203, %v202
    %v219 = vpack.c.b16 %v205, %v204
    %v220 = vpack.c.b16 %v207, %v206
    %v221 = vpack.c.b16 %v209, %v208
    %v222 = vpack.c.b16 %v211, %v210
    %v223 = vpack.c.b16 %v213, %v212
    %v224 = vpack.c.b16 %v215, %v214
    %v225 = vpack.c.b16 %v217, %v216
    %234 = vmatpush.bf16.msra.mxu0 %v225
    %235 = vmatpush.bf16.msra.mxu0 %v224
    %236 = vmatpush.bf16.msra.mxu0 %v223
    %237 = vmatpush.bf16.msra.mxu0 %v222
    %238 = vmatpush.bf16.msra.mxu0 %v221
    %239 = vmatpush.bf16.msra.mxu0 %v220
    %240 = vmatpush.bf16.msra.mxu0 %v219
    %241 = vmatpush.bf16.msra.mxu0 %v218
    %242 = vmatmul.bf16.gmra.mxu0 %v165
    %v243 = vpop.f32.mrf.mxu0
    %v244 = vadd.f32 %v184, %v243
    %v245 = vpop.f32.mrf.mxu0
    %v246 = vadd.f32 %v184, %v245
    %247 = vdwg.mxu0
    %v248 = vmax.f32 %v244, 0.0
    %v249 = vmax.f32 %v246, 0.0
    %v250 = vmin.f32 %v248, 6.0
    %v251 = vmin.f32 %v249, 6.0
    %v252 = vpack.c.bf16 %v250, %v250
    %v253 = vpack.c.bf16 %v251, %v251
    %254 = vst [vmem:[#allocation8] sm:$0xf] %v252
    %255 = vst [vmem:[#allocation8 + $0x4] sm:$0xf] %v253
    %v256 = vlaneseq
    %v257 = vshrl.u32 %v256, 7
    %v258 = vadd.s32 %v257, 8
    %s259 = smul.u32 0, 16
    %v260 = vstv %s259
    %v261 = vadd.s32 %v257, %v260
    %v262 = vadd.s32 %v258, %v260
    %vm263 = vcmp.lt.s32.totalorder %v261, 8
    %vm264 = vcmp.lt.s32.totalorder %v262, 8
    %v265 = vunpack.c.l.bf16 %v252
    %v266 = vunpack.c.l.bf16 %v253
    %v267 = vsel %vm263, 1, 0
    %v268 = vsel %vm264, 1, 0
    %vm269 = vcmp.eq.s32.totalorder %v267, 1
    %vm270 = vcmp.eq.s32.totalorder %v268, 1
    %v271 = vsel %vm269, %v265, 0.0
    %v272 = vsel %vm270, %v266, 0.0
    %v273 = vadd.f32 %v271, %v272
    %v274 = vrot.slane %v273, 4
    %v275 = vadd.f32 %v273, %v274
    %v276 = vrot.slane %v275, 2
    %v277 = vadd.f32 %v275, %v276
    %v278 = vrot.slane %v277, 1
    %v279 = vadd.f32 %v277, %v278
    %v280 = vmul.f32 %v271, %v271
    %v281 = vmul.f32 %v272, %v272
    %v282 = vadd.f32 %v280, %v281
    %v283 = vrot.slane %v282, 4
    %v284 = vadd.f32 %v282, %v283
    %v285 = vrot.slane %v284, 2
    %v286 = vadd.f32 %v284, %v285
    %v287 = vrot.slane %v286, 1
    %v288 = vadd.f32 %v286, %v287
    %vm289 = vcmask 1040384
    %v290 = vsel %vm289, %v279, %v288
    %vm291 = vcmask 1041408
    %v292 = vsel %vm291, %v290, 0.0
    %293 = vst [vmem:[#allocation9] sm:$0xff] %v292
    // Predicated region
    $region34: #{tpu_custom_call.1} parent=1 // pred_check
      _
    $region35: #{tpu_custom_call.1} parent=1 // pred_check_branch
      %295 = sbr.rel (0) target = $region37
    $region36: #{tpu_custom_call.1} parent=1 // pred_region
      %297 = vsyncadd [#allocation4], 0
      %s298 = sshll.u32 [#allocation8], 4
      %s299 = int_to_ptr.vmem [resolvable:$true] %s298
      %s300 = sshll.u32 %s5, 4
      %s301 = int_to_ptr.hbm [resolvable:$true] %s300
      %306 = dma.vmem_to_hbm [thread:$0]  %s299, 128, %s301, [#allocation4], 64, 64, 4
    $region37: #{tpu_custom_call.1} parent=1 // pred_fallthru
      _
    // Predicated region
    $region38: #{tpu_custom_call.1} parent=1 // pred_check
      _
    $region39: #{tpu_custom_call.1} parent=1 // pred_check_branch
      %308 = sbr.rel (0) target = $region41
    $region40: #{tpu_custom_call.1} parent=1 // pred_region
      %310 = vsyncadd [#allocation10], 0
      %s312 = sshll.u32 [#allocation9], 4
      %s313 = int_to_ptr.vmem [resolvable:$true] %s312
      %s314 = sshll.u32 %s6, 4
      %s315 = int_to_ptr.hbm [resolvable:$true] %s314
      %317 = dma.vmem_to_hbm [thread:$0]  %s313, 128, %s315, [#allocation10]
    $region41: #{tpu_custom_call.1} parent=1 // pred_fallthru
      _
    // Predicated region
    $region42: #{tpu_custom_call.1} parent=1 // pred_check
      _
    $region43: #{tpu_custom_call.1} parent=1 // pred_check_branch
      %319 = sbr.rel (0) target = $region45
    $region44: #{tpu_custom_call.1} parent=1 // pred_region
      %321 = dma.done [#allocation4], 128
    $region45: #{tpu_custom_call.1} parent=1 // pred_fallthru
      _
    // Predicated region
    $region46: #{tpu_custom_call.1} parent=1 // pred_check
      _
    $region47: #{tpu_custom_call.1} parent=1 // pred_check_branch
      %323 = sbr.rel (0) target = $region49
    $region48: #{tpu_custom_call.1} parent=1 // pred_region
      %325 = dma.done [#allocation10], 128
    $region49: #{tpu_custom_call.1} parent=1 // pred_fallthru
      _
    %326 = vsyncpa [#allocation3], 1
    %327 = vsyncpa [#allocation6], 1
    %328 = vsyncpa [#allocation4], 1
    %329 = vsyncpa [#allocation10], 1

</llo_original>
